<compile_context>
chip_gen: v7x
topology: tpu7x:2x2x1
jax: 0.10.0
libtpu: 0.0.40
codegen_flags: <defaults>
</compile_context>

<pallas_src>
import jax
import jax.numpy as jnp
from jax.experimental import pallas as pl
from jax.experimental.pallas import tpu as pltpu


def _round_up(n, m):
    return ((n + m - 1) // m) * m


def mlp_kernel(xT_ref, w1_ref, b1_ref, w2_ref, b2_ref,
               w3_ref, b3_ref, w4_ref, b4_ref, oT_ref):
    xT = xT_ref[...]                                    # (2, TM) f32
    w1 = w1_ref[...]                                    # (128, 2) f32

    # Layer 1 (K=2): two VPU broadcast-FMAs instead of an almost-empty MXU matmul.
    h = w1[:, 0:1] * xT[0:1, :] + w1[:, 1:2] * xT[1:2, :] + b1_ref[...]
    h = jnp.maximum(h, 0.0)                             # (128, TM) f32
    # dropout(p=0.2): eval-mode identity.

    # Layer 2 + ReLU: bf16 MXU operands, f32 accumulation.
    h = jnp.dot(w2_ref[...], h.astype(jnp.bfloat16),
                preferred_element_type=jnp.float32) + b2_ref[...]
    h = jnp.maximum(h, 0.0)                             # (64, TM) f32
    # dropout(p=0.2): eval-mode identity.

    # Layer 3 + ReLU.
    h = jnp.dot(w3_ref[...], h.astype(jnp.bfloat16),
                preferred_element_type=jnp.float32) + b3_ref[...]
    h = jnp.maximum(h, 0.0)                             # (32, TM) f32

    # Output layer (no activation).
    o = jnp.dot(w4_ref[...], h.astype(jnp.bfloat16),
                preferred_element_type=jnp.float32) + b4_ref[...]
    oT_ref[...] = o.astype(oT_ref.dtype)                # (2, TM)


def mlp_forward(x, params, *, tile_cap=4096):
    """x: [B, 2].  params: weights [out, in], biases [out, 1] (float32)."""
    w1, b1 = params["w1"], params["b1"]   # (128, 2), (128, 1)
    w2, b2 = params["w2"], params["b2"]   # (64, 128), (64, 1)
    w3, b3 = params["w3"], params["b3"]   # (32, 64),  (32, 1)
    w4, b4 = params["w4"], params["b4"]   # (2, 32),   (2, 1)

    B = x.shape[0]

    # Batch tile: as large as the cap allows (multiple of 256 -> full v6e/v7x MXU
    # N-tile and unmasked full-lane stores), but small enough that the grid has
    # >= 2 tiles whenever B permits so both v7x TensorCores get work.
    half = max((B + 1) // 2, 1)
    TM = max(256, min(tile_cap, _round_up(half, 256)))
    grid = (pl.cdiv(B, TM),)

    # Feature-major layout: batch on the lane axis (lane-dense intermediates).
    xT = x.astype(jnp.float32).T                        # (2, B)

    # Pre-cast the MXU weights to bf16 (f32 matmul is multi-pass emulated).
    w2b = w2.astype(jnp.bfloat16)
    w3b = w3.astype(jnp.bfloat16)
    w4b = w4.astype(jnp.bfloat16)

    def moving(shape):
        return pl.BlockSpec(shape, lambda i: (0, i))

    def resident(shape):
        return pl.BlockSpec(shape, lambda i: (0, 0))

    flops = 2 * B * (2 * 128 + 128 * 64 + 64 * 32 + 32 * 2)
    param_bytes = sum(int(p.size) * p.dtype.itemsize
                      for p in (w1, b1, w2b, b2, w3b, b3, w4b, b4))
    # x read + out write (logical) + params fetched once.
    bytes_accessed = 4 * 2 * B * 2 + param_bytes

    outT = pl.pallas_call(
        mlp_kernel,
        out_shape=jax.ShapeDtypeStruct((2, B), jnp.float32),
        grid=grid,
        in_specs=[
            moving((2, TM)),
            resident(w1.shape), resident(b1.shape),
            resident(w2b.shape), resident(b2.shape),
            resident(w3b.shape), resident(b3.shape),
            resident(w4b.shape), resident(b4.shape),
        ],
        out_specs=moving((2, TM)),
        compiler_params=pltpu.CompilerParams(
            dimension_semantics=("parallel",)),
        cost_estimate=pl.CostEstimate(
            flops=flops, transcendentals=0, bytes_accessed=bytes_accessed),
    )(xT, w1, b1, w2b, b2, w3b, b3, w4b, b4)

    return outT.T                                       # (B, 2)


def init_params(key):
    """PyTorch nn.Linear-style init (uniform +/- 1/sqrt(fan_in)).
    Weights stored as [out_features, in_features]; biases as [out_features, 1]."""
    dims = [(2, 128), (128, 64), (64, 32), (32, 2)]
    params = {}
    for idx, (fan_in, fan_out) in enumerate(dims, start=1):
        key, kw, kb = jax.random.split(key, 3)
        bound = 1.0 / jnp.sqrt(float(fan_in))
        params[f"w{idx}"] = jax.random.uniform(
            kw, (fan_out, fan_in), jnp.float32, -bound, bound)
        params[f"b{idx}"] = jax.random.uniform(
            kb, (fan_out, 1), jnp.float32, -bound, bound)
    return params


def reference_forward(x, params):
    h = jnp.maximum(x @ params["w1"].T + params["b1"].T, 0.0)
    h = jnp.maximum(h @ params["w2"].T + params["b2"].T, 0.0)
    h = jnp.maximum(h @ params["w3"].T + params["b3"].T, 0.0)
    return h @ params["w4"].T + params["b4"].T


if __name__ == "__main__":
    key = jax.random.PRNGKey(0)
    key, kx = jax.random.split(key)
    batch = 8
    x = jax.random.normal(kx, (batch, 2), dtype=jnp.float32)

    params = init_params(key)

    out = mlp_forward(x, params)
    out = jax.block_until_ready(out)

    ref = reference_forward(x, params)
    assert out.shape == (batch, 2)
    # bf16 MXU operands (f32 accumulation) -> loosened tolerance vs. f32 reference.
    assert jnp.allclose(out, ref, atol=3e-2, rtol=3e-2), (
        float(jnp.max(jnp.abs(out - ref))))

    print("KERNEL_OK")
</pallas_src>

<mosaic_0001>
module attributes {stable_mosaic.version = 11 : i64} {
  func.func @mlp_kernel(%arg0: i32, %arg1: memref<2x256xf32, #tpu.memory_space<vmem>>, %arg2: memref<128x2xf32, #tpu.memory_space<vmem>>, %arg3: memref<128x1xf32, #tpu.memory_space<vmem>>, %arg4: memref<64x128xbf16, #tpu.memory_space<vmem>>, %arg5: memref<64x1xf32, #tpu.memory_space<vmem>>, %arg6: memref<32x64xbf16, #tpu.memory_space<vmem>>, %arg7: memref<32x1xf32, #tpu.memory_space<vmem>>, %arg8: memref<2x32xbf16, #tpu.memory_space<vmem>>, %arg9: memref<2x1xf32, #tpu.memory_space<vmem>>, %arg10: memref<2x256xf32, #tpu.memory_space<vmem>>) attributes {dimension_semantics = [#tpu.dimension_semantics<parallel>], iteration_bounds = array<i64: 1>, scalar_prefetch = 0 : i64, scratch_operands = 0 : i64, tpu.core_type = #tpu.core_type<tc>, window_params = [{transform_indices = @transform_0, window_bounds = array<i64: 2, 256>}, {pipeline_mode = #tpu.pipeline_mode<synchronous>, transform_indices = @transform_1, window_bounds = array<i64: 128, 2>}, {pipeline_mode = #tpu.pipeline_mode<synchronous>, transform_indices = @transform_2, window_bounds = array<i64: 128, 1>}, {pipeline_mode = #tpu.pipeline_mode<synchronous>, transform_indices = @transform_3, window_bounds = array<i64: 64, 128>}, {pipeline_mode = #tpu.pipeline_mode<synchronous>, transform_indices = @transform_4, window_bounds = array<i64: 64, 1>}, {pipeline_mode = #tpu.pipeline_mode<synchronous>, transform_indices = @transform_5, window_bounds = array<i64: 32, 64>}, {pipeline_mode = #tpu.pipeline_mode<synchronous>, transform_indices = @transform_6, window_bounds = array<i64: 32, 1>}, {pipeline_mode = #tpu.pipeline_mode<synchronous>, transform_indices = @transform_7, window_bounds = array<i64: 2, 32>}, {pipeline_mode = #tpu.pipeline_mode<synchronous>, transform_indices = @transform_8, window_bounds = array<i64: 2, 1>}, {transform_indices = @transform_9, window_bounds = array<i64: 2, 256>}]} {
    %c0 = arith.constant 0 : index
    %c0_0 = arith.constant 0 : index
    %0 = vector.load %arg1[%c0, %c0_0] : memref<2x256xf32, #tpu.memory_space<vmem>>, vector<2x256xf32>
    %c0_1 = arith.constant 0 : index
    %c0_2 = arith.constant 0 : index
    %1 = vector.load %arg2[%c0_1, %c0_2] : memref<128x2xf32, #tpu.memory_space<vmem>>, vector<128x2xf32>
    %2 = vector.extract_strided_slice %1 {offsets = [0, 0], sizes = [128, 1], strides = [1, 1]} : vector<128x2xf32> to vector<128x1xf32>
    %3 = vector.extract_strided_slice %0 {offsets = [0, 0], sizes = [1, 256], strides = [1, 1]} : vector<2x256xf32> to vector<1x256xf32>
    %4 = vector.broadcast %2 : vector<128x1xf32> to vector<128x256xf32>
    %5 = vector.broadcast %3 : vector<1x256xf32> to vector<128x256xf32>
    %6 = arith.mulf %4, %5 : vector<128x256xf32>
    %7 = vector.extract_strided_slice %1 {offsets = [0, 1], sizes = [128, 1], strides = [1, 1]} : vector<128x2xf32> to vector<128x1xf32>
    %8 = vector.extract_strided_slice %0 {offsets = [1, 0], sizes = [1, 256], strides = [1, 1]} : vector<2x256xf32> to vector<1x256xf32>
    %9 = vector.broadcast %7 : vector<128x1xf32> to vector<128x256xf32>
    %10 = vector.broadcast %8 : vector<1x256xf32> to vector<128x256xf32>
    %11 = arith.mulf %9, %10 : vector<128x256xf32>
    %12 = arith.addf %6, %11 : vector<128x256xf32>
    %c0_3 = arith.constant 0 : index
    %c0_4 = arith.constant 0 : index
    %13 = vector.load %arg3[%c0_3, %c0_4] : memref<128x1xf32, #tpu.memory_space<vmem>>, vector<128x1xf32>
    %14 = vector.broadcast %13 : vector<128x1xf32> to vector<128x256xf32>
    %15 = arith.addf %12, %14 : vector<128x256xf32>
    %cst = arith.constant 0.000000e+00 : f32
    %16 = vector.broadcast %cst : f32 to vector<128x256xf32>
    %17 = arith.maximumf %15, %16 : vector<128x256xf32>
    %c0_5 = arith.constant 0 : index
    %c0_6 = arith.constant 0 : index
    %18 = vector.load %arg4[%c0_5, %c0_6] : memref<64x128xbf16, #tpu.memory_space<vmem>>, vector<64x128xbf16>
    %19 = arith.truncf %17 : vector<128x256xf32> to vector<128x256xbf16>
    %cst_7 = arith.constant dense<0.000000e+00> : vector<64x256xf32>
    %20 = tpu.matmul %18, %19, %cst_7 {dimension_numbers = #tpu.dot_dimension_numbers<[1], [0], [0], [1], [0, 0, 1, 1], [], []>} : vector<64x128xbf16>, vector<128x256xbf16>, vector<64x256xf32> -> vector<64x256xf32>
    %c0_8 = arith.constant 0 : index
    %c0_9 = arith.constant 0 : index
    %21 = vector.load %arg5[%c0_8, %c0_9] : memref<64x1xf32, #tpu.memory_space<vmem>>, vector<64x1xf32>
    %22 = vector.broadcast %21 : vector<64x1xf32> to vector<64x256xf32>
    %23 = arith.addf %20, %22 : vector<64x256xf32>
    %cst_10 = arith.constant 0.000000e+00 : f32
    %24 = vector.broadcast %cst_10 : f32 to vector<64x256xf32>
    %25 = arith.maximumf %23, %24 : vector<64x256xf32>
    %c0_11 = arith.constant 0 : index
    %c0_12 = arith.constant 0 : index
    %26 = vector.load %arg6[%c0_11, %c0_12] : memref<32x64xbf16, #tpu.memory_space<vmem>>, vector<32x64xbf16>
    %27 = arith.truncf %25 : vector<64x256xf32> to vector<64x256xbf16>
    %cst_13 = arith.constant dense<0.000000e+00> : vector<32x256xf32>
    %28 = tpu.matmul %26, %27, %cst_13 {dimension_numbers = #tpu.dot_dimension_numbers<[1], [0], [0], [1], [0, 0, 1, 1], [], []>} : vector<32x64xbf16>, vector<64x256xbf16>, vector<32x256xf32> -> vector<32x256xf32>
    %c0_14 = arith.constant 0 : index
    %c0_15 = arith.constant 0 : index
    %29 = vector.load %arg7[%c0_14, %c0_15] : memref<32x1xf32, #tpu.memory_space<vmem>>, vector<32x1xf32>
    %30 = vector.broadcast %29 : vector<32x1xf32> to vector<32x256xf32>
    %31 = arith.addf %28, %30 : vector<32x256xf32>
    %cst_16 = arith.constant 0.000000e+00 : f32
    %32 = vector.broadcast %cst_16 : f32 to vector<32x256xf32>
    %33 = arith.maximumf %31, %32 : vector<32x256xf32>
    %c0_17 = arith.constant 0 : index
    %c0_18 = arith.constant 0 : index
    %34 = vector.load %arg8[%c0_17, %c0_18] : memref<2x32xbf16, #tpu.memory_space<vmem>>, vector<2x32xbf16>
    %35 = arith.truncf %33 : vector<32x256xf32> to vector<32x256xbf16>
    %cst_19 = arith.constant dense<0.000000e+00> : vector<2x256xf32>
    %36 = tpu.matmul %34, %35, %cst_19 {dimension_numbers = #tpu.dot_dimension_numbers<[1], [0], [0], [1], [0, 0, 1, 1], [], []>} : vector<2x32xbf16>, vector<32x256xbf16>, vector<2x256xf32> -> vector<2x256xf32>
    %c0_20 = arith.constant 0 : index
    %c0_21 = arith.constant 0 : index
    %37 = vector.load %arg9[%c0_20, %c0_21] : memref<2x1xf32, #tpu.memory_space<vmem>>, vector<2x1xf32>
    %38 = vector.broadcast %37 : vector<2x1xf32> to vector<2x256xf32>
    %39 = arith.addf %36, %38 : vector<2x256xf32>
    %c0_22 = arith.constant 0 : index
    %c0_23 = arith.constant 0 : index
    %40 = vector.load %arg10[%c0_22, %c0_23] : memref<2x256xf32, #tpu.memory_space<vmem>>, vector<2x256xf32>
    tpu.vector_store %arg10[%c0_22, %c0_23], %39 {strides = array<i32>} : memref<2x256xf32, #tpu.memory_space<vmem>>, vector<2x256xf32>,
    return
  }
  func.func @transform_0(%arg0: i32) -> (i32, i32) {
    %c0_i32 = arith.constant 0 : i32
    %c0_i32_0 = arith.constant 0 : i32
    return %c0_i32, %arg0 : i32, i32
  }
  func.func @transform_1(%arg0: i32) -> (i32, i32) {
    %c0_i32 = arith.constant 0 : i32
    %c0_i32_0 = arith.constant 0 : i32
    %c0_i32_1 = arith.constant 0 : i32
    return %c0_i32, %c0_i32_0 : i32, i32
  }
  func.func @transform_2(%arg0: i32) -> (i32, i32) {
    %c0_i32 = arith.constant 0 : i32
    %c0_i32_0 = arith.constant 0 : i32
    %c0_i32_1 = arith.constant 0 : i32
    return %c0_i32, %c0_i32_0 : i32, i32
  }
  func.func @transform_3(%arg0: i32) -> (i32, i32) {
    %c0_i32 = arith.constant 0 : i32
    %c0_i32_0 = arith.constant 0 : i32
    %c0_i32_1 = arith.constant 0 : i32
    return %c0_i32, %c0_i32_0 : i32, i32
  }
  func.func @transform_4(%arg0: i32) -> (i32, i32) {
    %c0_i32 = arith.constant 0 : i32
    %c0_i32_0 = arith.constant 0 : i32
    %c0_i32_1 = arith.constant 0 : i32
    return %c0_i32, %c0_i32_0 : i32, i32
  }
  func.func @transform_5(%arg0: i32) -> (i32, i32) {
    %c0_i32 = arith.constant 0 : i32
    %c0_i32_0 = arith.constant 0 : i32
    %c0_i32_1 = arith.constant 0 : i32
    return %c0_i32, %c0_i32_0 : i32, i32
  }
  func.func @transform_6(%arg0: i32) -> (i32, i32) {
    %c0_i32 = arith.constant 0 : i32
    %c0_i32_0 = arith.constant 0 : i32
    %c0_i32_1 = arith.constant 0 : i32
    return %c0_i32, %c0_i32_0 : i32, i32
  }
  func.func @transform_7(%arg0: i32) -> (i32, i32) {
    %c0_i32 = arith.constant 0 : i32
    %c0_i32_0 = arith.constant 0 : i32
    %c0_i32_1 = arith.constant 0 : i32
    return %c0_i32, %c0_i32_0 : i32, i32
  }
  func.func @transform_8(%arg0: i32) -> (i32, i32) {
    %c0_i32 = arith.constant 0 : i32
    %c0_i32_0 = arith.constant 0 : i32
    %c0_i32_1 = arith.constant 0 : i32
    return %c0_i32, %c0_i32_0 : i32, i32
  }
  func.func @transform_9(%arg0: i32) -> (i32, i32) {
    %c0_i32 = arith.constant 0 : i32
    %c0_i32_0 = arith.constant 0 : i32
    return %c0_i32, %arg0 : i32, i32
  }
}

</mosaic_0001>

<llo_original>
// kernel: tpu_custom_call.1
$region0: #{tpu_custom_call.1}
  #allocation0 [shape = 'u32[]', space=smem, size = 0x4, offset = 0x4, fixed_abs, tag = 'smem constant byte address 0x4 - core index']
  #allocation1 [shape = 'u32[144,128]{1,0:T(1,128)}', space=vmem, size = 0x12000, scoped, tag = 'internal scratch']
  %s0 = inlined_call_operand.vmem [shape: f32[2,8], index: 0, kind: input, shape index: {}]
  %s1 = inlined_call_operand.vmem [shape: f32[128,2], index: 1, kind: input, shape index: {}]
  %s2 = inlined_call_operand.vmem [shape: f32[128,1], index: 2, kind: input, shape index: {}]
  %s3 = inlined_call_operand.vmem [shape: bf16[64,128], index: 3, kind: input, shape index: {}]
  %s4 = inlined_call_operand.vmem [shape: f32[64,1], index: 4, kind: input, shape index: {}]
  %s5 = inlined_call_operand.vmem [shape: bf16[32,64], index: 5, kind: input, shape index: {}]
  %s6 = inlined_call_operand.vmem [shape: f32[32,1], index: 6, kind: input, shape index: {}]
  %s7 = inlined_call_operand.vmem [shape: bf16[2,32], index: 7, kind: input, shape index: {}]
  %s8 = inlined_call_operand.vmem [shape: f32[2,1], index: 8, kind: input, shape index: {}]
  %s9 = inlined_call_operand.hbm [shape: f32[2,8], index: 9, kind: output, shape index: {}]
  %s10 = sld [smem:[#allocation0]]
  $region46: #{tpu_custom_call.1} parent=0
    _
  %s12 = ssub.s32 1, %s10
  %s13 = scalar_select 0, %s12, %s10
  $region1: #{tpu_custom_call.1} parent=0
    #allocation2 [shape = 'u8[2048]{0}', space=vmem, size = 0x800, scoped, tag = 'output window, operand 0, single buffered']
    #allocation3 [shape = 's32[1]{0}', space=sflag, size = 0x4, scoped, tag = 'scoped memory for tpu_custom_call.1']
    %14 = vsyncpa [#allocation3], 0
    // Predicated region
    $region2: #{tpu_custom_call.1} parent=1 // pred_check
      _
    $region3: #{tpu_custom_call.1} parent=1 // pred_check_branch
      %16 = sbr.rel (0) target = $region5
    $region4: #{tpu_custom_call.1} parent=1 // pred_region
      _
    $region5: #{tpu_custom_call.1} parent=1 // pred_fallthru
      _
    // Predicated region
    $region6: #{tpu_custom_call.1} parent=1 // pred_check
      _
    $region7: #{tpu_custom_call.1} parent=1 // pred_check_branch
      %18 = sbr.rel (0) target = $region9
    $region8: #{tpu_custom_call.1} parent=1 // pred_region
      _
    $region9: #{tpu_custom_call.1} parent=1 // pred_fallthru
      _
    // Predicated region
    $region10: #{tpu_custom_call.1} parent=1 // pred_check
      _
    $region11: #{tpu_custom_call.1} parent=1 // pred_check_branch
      %20 = sbr.rel (0) target = $region13
    $region12: #{tpu_custom_call.1} parent=1 // pred_region
      _
    $region13: #{tpu_custom_call.1} parent=1 // pred_fallthru
      _
    // Predicated region
    $region14: #{tpu_custom_call.1} parent=1 // pred_check
      _
    $region15: #{tpu_custom_call.1} parent=1 // pred_check_branch
      %22 = sbr.rel (0) target = $region17
    $region16: #{tpu_custom_call.1} parent=1 // pred_region
      _
    $region17: #{tpu_custom_call.1} parent=1 // pred_fallthru
      _
    // Predicated region
    $region18: #{tpu_custom_call.1} parent=1 // pred_check
      _
    $region19: #{tpu_custom_call.1} parent=1 // pred_check_branch
      %24 = sbr.rel (0) target = $region21
    $region20: #{tpu_custom_call.1} parent=1 // pred_region
      _
    $region21: #{tpu_custom_call.1} parent=1 // pred_fallthru
      _
    // Predicated region
    $region22: #{tpu_custom_call.1} parent=1 // pred_check
      _
    $region23: #{tpu_custom_call.1} parent=1 // pred_check_branch
      %26 = sbr.rel (0) target = $region25
    $region24: #{tpu_custom_call.1} parent=1 // pred_region
      _
    $region25: #{tpu_custom_call.1} parent=1 // pred_fallthru
      _
    // Predicated region
    $region26: #{tpu_custom_call.1} parent=1 // pred_check
      _
    $region27: #{tpu_custom_call.1} parent=1 // pred_check_branch
      %28 = sbr.rel (0) target = $region29
    $region28: #{tpu_custom_call.1} parent=1 // pred_region
      _
    $region29: #{tpu_custom_call.1} parent=1 // pred_fallthru
      _
    // Predicated region
    $region30: #{tpu_custom_call.1} parent=1 // pred_check
      _
    $region31: #{tpu_custom_call.1} parent=1 // pred_check_branch
      %30 = sbr.rel (0) target = $region33
    $region32: #{tpu_custom_call.1} parent=1 // pred_region
      _
    $region33: #{tpu_custom_call.1} parent=1 // pred_fallthru
      _
    // Predicated region
    $region34: #{tpu_custom_call.1} parent=1 // pred_check
      _
    $region35: #{tpu_custom_call.1} parent=1 // pred_check_branch
      %32 = sbr.rel (0) target = $region37
    $region36: #{tpu_custom_call.1} parent=1 // pred_region
      _
    $region37: #{tpu_custom_call.1} parent=1 // pred_fallthru
      _
    %v34 = vld [vmem:[%s0] sm:$0xf]
    %v35 = vld [vmem:[%s1] sm:$0xff]
    %v36 = vld [vmem:[%s1 + $0x8] sm:$0xff]
    %v37 = vld [vmem:[%s1 + $0x10] sm:$0xff]
    %v38 = vld [vmem:[%s1 + $0x18] sm:$0xff]
    %v39 = vld [vmem:[%s1 + $0x20] sm:$0xff]
    %v40 = vld [vmem:[%s1 + $0x28] sm:$0xff]
    %v41 = vld [vmem:[%s1 + $0x30] sm:$0xff]
    %v42 = vld [vmem:[%s1 + $0x38] sm:$0xff]
    %v43 = vld [vmem:[%s1 + $0x40] sm:$0xff]
    %v44 = vld [vmem:[%s1 + $0x48] sm:$0xff]
    %v45 = vld [vmem:[%s1 + $0x50] sm:$0xff]
    %v46 = vld [vmem:[%s1 + $0x58] sm:$0xff]
    %v47 = vld [vmem:[%s1 + $0x60] sm:$0xff]
    %v48 = vld [vmem:[%s1 + $0x68] sm:$0xff]
    %v49 = vld [vmem:[%s1 + $0x70] sm:$0xff]
    %v50 = vld [vmem:[%s1 + $0x78] sm:$0xff]
    %52 = vset.pattern.permute.xlu0 0
    %53 = vperm.xlu0 %52, %v35
    %v54 = vpop.permute.xlu0 %53
    %57 = vset.pattern.permute.xlu0 0
    %58 = vperm.xlu0 %57, %v36
    %v59 = vpop.permute.xlu0 %58
    %62 = vset.pattern.permute.xlu0 0
    %63 = vperm.xlu0 %62, %v37
    %v64 = vpop.permute.xlu0 %63
    %67 = vset.pattern.permute.xlu0 0
    %68 = vperm.xlu0 %67, %v38
    %v69 = vpop.permute.xlu0 %68
    %72 = vset.pattern.permute.xlu0 0
    %73 = vperm.xlu0 %72, %v39
    %v74 = vpop.permute.xlu0 %73
    %77 = vset.pattern.permute.xlu0 0
    %78 = vperm.xlu0 %77, %v40
    %v79 = vpop.permute.xlu0 %78
    %82 = vset.pattern.permute.xlu0 0
    %83 = vperm.xlu0 %82, %v41
    %v84 = vpop.permute.xlu0 %83
    %87 = vset.pattern.permute.xlu0 0
    %88 = vperm.xlu0 %87, %v42
    %v89 = vpop.permute.xlu0 %88
    %92 = vset.pattern.permute.xlu0 0
    %93 = vperm.xlu0 %92, %v43
    %v94 = vpop.permute.xlu0 %93
    %97 = vset.pattern.permute.xlu0 0
    %98 = vperm.xlu0 %97, %v44
    %v99 = vpop.permute.xlu0 %98
    %102 = vset.pattern.permute.xlu0 0
    %103 = vperm.xlu0 %102, %v45
    %v104 = vpop.permute.xlu0 %103
    %107 = vset.pattern.permute.xlu0 0
    %108 = vperm.xlu0 %107, %v46
    %v109 = vpop.permute.xlu0 %108
    %112 = vset.pattern.permute.xlu0 0
    %113 = vperm.xlu0 %112, %v47
    %v114 = vpop.permute.xlu0 %113
    %117 = vset.pattern.permute.xlu0 0
    %118 = vperm.xlu0 %117, %v48
    %v119 = vpop.permute.xlu0 %118
    %122 = vset.pattern.permute.xlu0 0
    %123 = vperm.xlu0 %122, %v49
    %v124 = vpop.permute.xlu0 %123
    %127 = vset.pattern.permute.xlu0 0
    %128 = vperm.xlu0 %127, %v50
    %v129 = vpop.permute.xlu0 %128
    %v132 = vlaneseq
    %v133 = vshrl.u32 %v132, 7
    %v134 = vsub.s32 0, %v133
    %v135 = vrot.slane %v34, %v134
    %v136 = vlaneseq
    %v137 = vshrl.u32 %v136, 7
    %v138 = vsub.s32 2, %v137
    %v139 = vrot.slane %v34, %v138
    %v142 = vlaneseq
    %v143 = vshrl.u32 %v142, 7
    %v144 = vsub.s32 0, %v143
    %v145 = vrot.slane %v135, %v144
    %v146 = vlaneseq
    %v147 = vshrl.u32 %v146, 7
    %v148 = vsub.s32 0, %v147
    %v149 = vrot.slane %v139, %v148
    %v150 = vmul.f32 %v54, %v145
    %v151 = vmul.f32 %v54, %v149
    %v152 = vmul.f32 %v59, %v145
    %v153 = vmul.f32 %v59, %v149
    %v154 = vmul.f32 %v64, %v145
    %v155 = vmul.f32 %v64, %v149
    %v156 = vmul.f32 %v69, %v145
    %v157 = vmul.f32 %v69, %v149
    %v158 = vmul.f32 %v74, %v145
    %v159 = vmul.f32 %v74, %v149
    %v160 = vmul.f32 %v79, %v145
    %v161 = vmul.f32 %v79, %v149
    %v162 = vmul.f32 %v84, %v145
    %v163 = vmul.f32 %v84, %v149
    %v164 = vmul.f32 %v89, %v145
    %v165 = vmul.f32 %v89, %v149
    %v166 = vmul.f32 %v94, %v145
    %v167 = vmul.f32 %v94, %v149
    %v168 = vmul.f32 %v99, %v145
    %v169 = vmul.f32 %v99, %v149
    %v170 = vmul.f32 %v104, %v145
    %v171 = vmul.f32 %v104, %v149
    %v172 = vmul.f32 %v109, %v145
    %v173 = vmul.f32 %v109, %v149
    %v174 = vmul.f32 %v114, %v145
    %v175 = vmul.f32 %v114, %v149
    %v176 = vmul.f32 %v119, %v145
    %v177 = vmul.f32 %v119, %v149
    %v178 = vmul.f32 %v124, %v145
    %v179 = vmul.f32 %v124, %v149
    %v180 = vmul.f32 %v129, %v145
    %v181 = vmul.f32 %v129, %v149
    %182 = vset.pattern.permute.xlu0 1
    %183 = vperm.xlu0 %182, %v35
    %v184 = vpop.permute.xlu0 %183
    %186 = vset.pattern.permute.xlu0 1
    %187 = vperm.xlu0 %186, %v36
    %v188 = vpop.permute.xlu0 %187
    %190 = vset.pattern.permute.xlu0 1
    %191 = vperm.xlu0 %190, %v37
    %v192 = vpop.permute.xlu0 %191
    %194 = vset.pattern.permute.xlu0 1
    %195 = vperm.xlu0 %194, %v38
    %v196 = vpop.permute.xlu0 %195
    %198 = vset.pattern.permute.xlu0 1
    %199 = vperm.xlu0 %198, %v39
    %v200 = vpop.permute.xlu0 %199
    %202 = vset.pattern.permute.xlu0 1
    %203 = vperm.xlu0 %202, %v40
    %v204 = vpop.permute.xlu0 %203
    %206 = vset.pattern.permute.xlu0 1
    %207 = vperm.xlu0 %206, %v41
    %v208 = vpop.permute.xlu0 %207
    %210 = vset.pattern.permute.xlu0 1
    %211 = vperm.xlu0 %210, %v42
    %v212 = vpop.permute.xlu0 %211
    %214 = vset.pattern.permute.xlu0 1
    %215 = vperm.xlu0 %214, %v43
    %v216 = vpop.permute.xlu0 %215
    %218 = vset.pattern.permute.xlu0 1
    %219 = vperm.xlu0 %218, %v44
    %v220 = vpop.permute.xlu0 %219
    %222 = vset.pattern.permute.xlu0 1
    %223 = vperm.xlu0 %222, %v45
    %v224 = vpop.permute.xlu0 %223
    %226 = vset.pattern.permute.xlu0 1
    %227 = vperm.xlu0 %226, %v46
    %v228 = vpop.permute.xlu0 %227
    %230 = vset.pattern.permute.xlu0 1
    %231 = vperm.xlu0 %230, %v47
    %v232 = vpop.permute.xlu0 %231
    %234 = vset.pattern.permute.xlu0 1
    %235 = vperm.xlu0 %234, %v48
    %v236 = vpop.permute.xlu0 %235
    %238 = vset.pattern.permute.xlu0 1
    %239 = vperm.xlu0 %238, %v49
    %v240 = vpop.permute.xlu0 %239
    %242 = vset.pattern.permute.xlu0 1
    %243 = vperm.xlu0 %242, %v50
    %v244 = vpop.permute.xlu0 %243
    %v246 = vlaneseq
    %v247 = vshrl.u32 %v246, 7
    %v248 = vsub.s32 1, %v247
    %v249 = vrot.slane %v34, %v248
    %v250 = vlaneseq
    %v251 = vshrl.u32 %v250, 7
    %v252 = vsub.s32 3, %v251
    %v253 = vrot.slane %v34, %v252
    %v256 = vlaneseq
    %v257 = vshrl.u32 %v256, 7
    %v258 = vsub.s32 1, %v257
    %v259 = vrot.slane %v249, %v258
    %v260 = vlaneseq
    %v261 = vshrl.u32 %v260, 7
    %v262 = vsub.s32 1, %v261
    %v263 = vrot.slane %v253, %v262
    %v264 = vmul.f32 %v184, %v259
    %v265 = vmul.f32 %v184, %v263
    %v266 = vmul.f32 %v188, %v259
    %v267 = vmul.f32 %v188, %v263
    %v268 = vmul.f32 %v192, %v259
    %v269 = vmul.f32 %v192, %v263
    %v270 = vmul.f32 %v196, %v259
    %v271 = vmul.f32 %v196, %v263
    %v272 = vmul.f32 %v200, %v259
    %v273 = vmul.f32 %v200, %v263
    %v274 = vmul.f32 %v204, %v259
    %v275 = vmul.f32 %v204, %v263
    %v276 = vmul.f32 %v208, %v259
    %v277 = vmul.f32 %v208, %v263
    %v278 = vmul.f32 %v212, %v259
    %v279 = vmul.f32 %v212, %v263
    %v280 = vmul.f32 %v216, %v259
    %v281 = vmul.f32 %v216, %v263
    %v282 = vmul.f32 %v220, %v259
    %v283 = vmul.f32 %v220, %v263
    %v284 = vmul.f32 %v224, %v259
    %v285 = vmul.f32 %v224, %v263
    %v286 = vmul.f32 %v228, %v259
    %v287 = vmul.f32 %v228, %v263
    %v288 = vmul.f32 %v232, %v259
    %v289 = vmul.f32 %v232, %v263
    %v290 = vmul.f32 %v236, %v259
    %v291 = vmul.f32 %v236, %v263
    %v292 = vmul.f32 %v240, %v259
    %v293 = vmul.f32 %v240, %v263
    %v294 = vmul.f32 %v244, %v259
    %v295 = vmul.f32 %v244, %v263
    %v296 = vadd.f32 %v150, %v264
    %v297 = vadd.f32 %v151, %v265
    %v298 = vadd.f32 %v152, %v266
    %v299 = vadd.f32 %v153, %v267
    %v300 = vadd.f32 %v154, %v268
    %v301 = vadd.f32 %v155, %v269
    %v302 = vadd.f32 %v156, %v270
    %v303 = vadd.f32 %v157, %v271
    %v304 = vadd.f32 %v158, %v272
    %v305 = vadd.f32 %v159, %v273
    %v306 = vadd.f32 %v160, %v274
    %v307 = vadd.f32 %v161, %v275
    %v308 = vadd.f32 %v162, %v276
    %v309 = vadd.f32 %v163, %v277
    %v310 = vadd.f32 %v164, %v278
    %v311 = vadd.f32 %v165, %v279
    %v312 = vadd.f32 %v166, %v280
    %v313 = vadd.f32 %v167, %v281
    %v314 = vadd.f32 %v168, %v282
    %v315 = vadd.f32 %v169, %v283
    %v316 = vadd.f32 %v170, %v284
    %v317 = vadd.f32 %v171, %v285
    %v318 = vadd.f32 %v172, %v286
    %v319 = vadd.f32 %v173, %v287
    %v320 = vadd.f32 %v174, %v288
    %v321 = vadd.f32 %v175, %v289
    %v322 = vadd.f32 %v176, %v290
    %v323 = vadd.f32 %v177, %v291
    %v324 = vadd.f32 %v178, %v292
    %v325 = vadd.f32 %v179, %v293
    %v326 = vadd.f32 %v180, %v294
    %v327 = vadd.f32 %v181, %v295
    %v328 = vld [vmem:[%s2] sm:$0xff]
    %v329 = vld [vmem:[%s2 + $0x8] sm:$0xff]
    %v330 = vld [vmem:[%s2 + $0x10] sm:$0xff]
    %v331 = vld [vmem:[%s2 + $0x18] sm:$0xff]
    %v332 = vld [vmem:[%s2 + $0x20] sm:$0xff]
    %v333 = vld [vmem:[%s2 + $0x28] sm:$0xff]
    %v334 = vld [vmem:[%s2 + $0x30] sm:$0xff]
    %v335 = vld [vmem:[%s2 + $0x38] sm:$0xff]
    %v336 = vld [vmem:[%s2 + $0x40] sm:$0xff]
    %v337 = vld [vmem:[%s2 + $0x48] sm:$0xff]
    %v338 = vld [vmem:[%s2 + $0x50] sm:$0xff]
    %v339 = vld [vmem:[%s2 + $0x58] sm:$0xff]
    %v340 = vld [vmem:[%s2 + $0x60] sm:$0xff]
    %v341 = vld [vmem:[%s2 + $0x68] sm:$0xff]
    %v342 = vld [vmem:[%s2 + $0x70] sm:$0xff]
    %v343 = vld [vmem:[%s2 + $0x78] sm:$0xff]
    %345 = vset.pattern.permute.xlu0 0
    %346 = vperm.xlu0 %345, %v328
    %v347 = vpop.permute.xlu0 %346
    %350 = vset.pattern.permute.xlu0 0
    %351 = vperm.xlu0 %350, %v329
    %v352 = vpop.permute.xlu0 %351
    %355 = vset.pattern.permute.xlu0 0
    %356 = vperm.xlu0 %355, %v330
    %v357 = vpop.permute.xlu0 %356
    %360 = vset.pattern.permute.xlu0 0
    %361 = vperm.xlu0 %360, %v331
    %v362 = vpop.permute.xlu0 %361
    %365 = vset.pattern.permute.xlu0 0
    %366 = vperm.xlu0 %365, %v332
    %v367 = vpop.permute.xlu0 %366
    %370 = vset.pattern.permute.xlu0 0
    %371 = vperm.xlu0 %370, %v333
    %v372 = vpop.permute.xlu0 %371
    %375 = vset.pattern.permute.xlu0 0
    %376 = vperm.xlu0 %375, %v334
    %v377 = vpop.permute.xlu0 %376
    %380 = vset.pattern.permute.xlu0 0
    %381 = vperm.xlu0 %380, %v335
    %v382 = vpop.permute.xlu0 %381
    %385 = vset.pattern.permute.xlu0 0
    %386 = vperm.xlu0 %385, %v336
    %v387 = vpop.permute.xlu0 %386
    %390 = vset.pattern.permute.xlu0 0
    %391 = vperm.xlu0 %390, %v337
    %v392 = vpop.permute.xlu0 %391
    %395 = vset.pattern.permute.xlu0 0
    %396 = vperm.xlu0 %395, %v338
    %v397 = vpop.permute.xlu0 %396
    %400 = vset.pattern.permute.xlu0 0
    %401 = vperm.xlu0 %400, %v339
    %v402 = vpop.permute.xlu0 %401
    %405 = vset.pattern.permute.xlu0 0
    %406 = vperm.xlu0 %405, %v340
    %v407 = vpop.permute.xlu0 %406
    %410 = vset.pattern.permute.xlu0 0
    %411 = vperm.xlu0 %410, %v341
    %v412 = vpop.permute.xlu0 %411
    %415 = vset.pattern.permute.xlu0 0
    %416 = vperm.xlu0 %415, %v342
    %v417 = vpop.permute.xlu0 %416
    %420 = vset.pattern.permute.xlu0 0
    %421 = vperm.xlu0 %420, %v343
    %v422 = vpop.permute.xlu0 %421
    %v424 = vadd.f32 %v296, %v347
    %v425 = vadd.f32 %v297, %v347
    %v426 = vadd.f32 %v298, %v352
    %v427 = vadd.f32 %v299, %v352
    %v428 = vadd.f32 %v300, %v357
    %v429 = vadd.f32 %v301, %v357
    %v430 = vadd.f32 %v302, %v362
    %v431 = vadd.f32 %v303, %v362
    %v432 = vadd.f32 %v304, %v367
    %v433 = vadd.f32 %v305, %v367
    %v434 = vadd.f32 %v306, %v372
    %v435 = vadd.f32 %v307, %v372
    %v436 = vadd.f32 %v308, %v377
    %v437 = vadd.f32 %v309, %v377
    %v438 = vadd.f32 %v310, %v382
    %v439 = vadd.f32 %v311, %v382
    %v440 = vadd.f32 %v312, %v387
    %v441 = vadd.f32 %v313, %v387
    %v442 = vadd.f32 %v314, %v392
    %v443 = vadd.f32 %v315, %v392
    %v444 = vadd.f32 %v316, %v397
    %v445 = vadd.f32 %v317, %v397
    %v446 = vadd.f32 %v318, %v402
    %v447 = vadd.f32 %v319, %v402
    %v448 = vadd.f32 %v320, %v407
    %v449 = vadd.f32 %v321, %v407
    %v450 = vadd.f32 %v322, %v412
    %v451 = vadd.f32 %v323, %v412
    %v452 = vadd.f32 %v324, %v417
    %v453 = vadd.f32 %v325, %v417
    %v454 = vadd.f32 %v326, %v422
    %v455 = vadd.f32 %v327, %v422
    %v456 = vmax.f32 %v424, 0.0
    %v457 = vmax.f32 %v425, 0.0
    %v458 = vmax.f32 %v426, 0.0
    %v459 = vmax.f32 %v427, 0.0
    %v460 = vmax.f32 %v428, 0.0
    %v461 = vmax.f32 %v429, 0.0
    %v462 = vmax.f32 %v430, 0.0
    %v463 = vmax.f32 %v431, 0.0
    %v464 = vmax.f32 %v432, 0.0
    %v465 = vmax.f32 %v433, 0.0
    %v466 = vmax.f32 %v434, 0.0
    %v467 = vmax.f32 %v435, 0.0
    %v468 = vmax.f32 %v436, 0.0
    %v469 = vmax.f32 %v437, 0.0
    %v470 = vmax.f32 %v438, 0.0
    %v471 = vmax.f32 %v439, 0.0
    %v472 = vmax.f32 %v440, 0.0
    %v473 = vmax.f32 %v441, 0.0
    %v474 = vmax.f32 %v442, 0.0
    %v475 = vmax.f32 %v443, 0.0
    %v476 = vmax.f32 %v444, 0.0
    %v477 = vmax.f32 %v445, 0.0
    %v478 = vmax.f32 %v446, 0.0
    %v479 = vmax.f32 %v447, 0.0
    %v480 = vmax.f32 %v448, 0.0
    %v481 = vmax.f32 %v449, 0.0
    %v482 = vmax.f32 %v450, 0.0
    %v483 = vmax.f32 %v451, 0.0
    %v484 = vmax.f32 %v452, 0.0
    %v485 = vmax.f32 %v453, 0.0
    %v486 = vmax.f32 %v454, 0.0
    %v487 = vmax.f32 %v455, 0.0
    %v488 = vld [vmem:[%s3] sm:$0xf]
    %v489 = vld [vmem:[%s3 + $0x4] sm:$0xf]
    %v490 = vld [vmem:[%s3 + $0x8] sm:$0xf]
    %v491 = vld [vmem:[%s3 + $0xc] sm:$0xf]
    %v492 = vld [vmem:[%s3 + $0x10] sm:$0xf]
    %v493 = vld [vmem:[%s3 + $0x14] sm:$0xf]
    %v494 = vld [vmem:[%s3 + $0x18] sm:$0xf]
    %v495 = vld [vmem:[%s3 + $0x1c] sm:$0xf]
    %v496 = vpack.c.bf16 %v458, %v456
    %v497 = vpack.c.bf16 %v459, %v457
    %v498 = vpack.c.bf16 %v462, %v460
    %v499 = vpack.c.bf16 %v463, %v461
    %v500 = vpack.c.bf16 %v466, %v464
    %v501 = vpack.c.bf16 %v467, %v465
    %v502 = vpack.c.bf16 %v470, %v468
    %v503 = vpack.c.bf16 %v471, %v469
    %v504 = vpack.c.bf16 %v474, %v472
    %v505 = vpack.c.bf16 %v475, %v473
    %v506 = vpack.c.bf16 %v478, %v476
    %v507 = vpack.c.bf16 %v479, %v477
    %v508 = vpack.c.bf16 %v482, %v480
    %v509 = vpack.c.bf16 %v483, %v481
    %v510 = vpack.c.bf16 %v486, %v484
    %v511 = vpack.c.bf16 %v487, %v485
    %v512 = vld [vmem:[%s4] sm:$0xff]
    %v513 = vld [vmem:[%s4 + $0x8] sm:$0xff]
    %v514 = vld [vmem:[%s4 + $0x10] sm:$0xff]
    %v515 = vld [vmem:[%s4 + $0x18] sm:$0xff]
    %v516 = vld [vmem:[%s4 + $0x20] sm:$0xff]
    %v517 = vld [vmem:[%s4 + $0x28] sm:$0xff]
    %v518 = vld [vmem:[%s4 + $0x30] sm:$0xff]
    %v519 = vld [vmem:[%s4 + $0x38] sm:$0xff]
    %521 = vset.pattern.permute.xlu0 0
    %522 = vperm.xlu0 %521, %v512
    %v523 = vpop.permute.xlu0 %522
    %526 = vset.pattern.permute.xlu0 0
    %527 = vperm.xlu0 %526, %v513
    %v528 = vpop.permute.xlu0 %527
    %531 = vset.pattern.permute.xlu0 0
    %532 = vperm.xlu0 %531, %v514
    %v533 = vpop.permute.xlu0 %532
    %536 = vset.pattern.permute.xlu0 0
    %537 = vperm.xlu0 %536, %v515
    %v538 = vpop.permute.xlu0 %537
    %541 = vset.pattern.permute.xlu0 0
    %542 = vperm.xlu0 %541, %v516
    %v543 = vpop.permute.xlu0 %542
    %546 = vset.pattern.permute.xlu0 0
    %547 = vperm.xlu0 %546, %v517
    %v548 = vpop.permute.xlu0 %547
    %551 = vset.pattern.permute.xlu0 0
    %552 = vperm.xlu0 %551, %v518
    %v553 = vpop.permute.xlu0 %552
    %556 = vset.pattern.permute.xlu0 0
    %557 = vperm.xlu0 %556, %v519
    %v558 = vpop.permute.xlu0 %557
    %v568 = vunpack.c.l.b16 %v488
    %v569 = vunpack.c.l.b16 %v489
    %v570 = vunpack.c.l.b16 %v490
    %v571 = vunpack.c.l.b16 %v491
    %v572 = vunpack.c.l.b16 %v492
    %v573 = vunpack.c.l.b16 %v493
    %v574 = vunpack.c.l.b16 %v494
    %v575 = vunpack.c.l.b16 %v495
    %v576 = vpack.c.b16 %v569, %v568
    %v577 = vpack.c.b16 %v571, %v570
    %v578 = vpack.c.b16 %v573, %v572
    %v579 = vpack.c.b16 %v575, %v574
    %584 = vmatprep.subr.bf16.mxu0 %v497
    %585 = vmatpush1.bf16.msra.mxu0 %v496
    %586 = vmatprep.subr.bf16.mxu0 %v499
    %587 = vmatpush1.bf16.msra.mxu0 %v498
    %588 = vmatprep.subr.bf16.mxu0 %v501
    %589 = vmatpush1.bf16.msra.mxu0 %v500
    %590 = vmatprep.subr.bf16.mxu0 %v503
    %591 = vmatpush1.bf16.msra.mxu0 %v502
    %592 = vmatprep.subr.bf16.mxu0 %v505
    %593 = vmatpush1.bf16.msra.mxu0 %v504
    %594 = vmatprep.subr.bf16.mxu0 %v507
    %595 = vmatpush1.bf16.msra.mxu0 %v506
    %596 = vmatprep.subr.bf16.mxu0 %v509
    %597 = vmatpush1.bf16.msra.mxu0 %v508
    %598 = vmatprep.subr.bf16.mxu0 %v511
    %599 = vmatpush1.bf16.msra.mxu0 %v510
    %600 = vmatprep.subr.bf16.mxu0 0
    %601 = vmatpush1.bf16.msra.mxu0 0
    %602 = vmatprep.subr.bf16.mxu0 0
    %603 = vmatpush1.bf16.msra.mxu0 0
    %604 = vmatprep.subr.bf16.mxu0 0
    %605 = vmatpush1.bf16.msra.mxu0 0
    %606 = vmatprep.subr.bf16.mxu0 0
    %607 = vmatpush1.bf16.msra.mxu0 0
    %608 = vmatprep.subr.bf16.mxu0 0
    %609 = vmatpush1.bf16.msra.mxu0 0
    %610 = vmatprep.subr.bf16.mxu0 0
    %611 = vmatpush1.bf16.msra.mxu0 0
    %612 = vmatprep.subr.bf16.mxu0 0
    %613 = vmatpush1.bf16.msra.mxu0 0
    %614 = vmatprep.subr.bf16.mxu0 0
    %615 = vmatpush1.bf16.msra.mxu0 0
    %616 = vmatprep.mubr.bf16.mxu0 0
    %617 = vmatmul.mubr.bf16.gmra.mrb[0].mxu0 %v576
    %v618 = vpop.f32.mrb[0].mxu0
    %v619 = vadd.f32 %v523, %v618
    %v620 = vpop.f32.mrb[0].mxu0
    %v621 = vadd.f32 %v523, %v620
    %v622 = vpop.f32.mrb[0].mxu0
    %v623 = vadd.f32 %v528, %v622
    %v624 = vpop.f32.mrb[0].mxu0
    %v625 = vadd.f32 %v528, %v624
    %626 = vmatprep.mubr.bf16.mxu0 0
    %627 = vmatmul.mubr.bf16.gmra.mrb[0].mxu0 %v577
    %v628 = vpop.f32.mrb[0].mxu0
    %v629 = vadd.f32 %v533, %v628
    %v630 = vpop.f32.mrb[0].mxu0
    %v631 = vadd.f32 %v533, %v630
    %v632 = vpop.f32.mrb[0].mxu0
    %v633 = vadd.f32 %v538, %v632
    %v634 = vpop.f32.mrb[0].mxu0
    %v635 = vadd.f32 %v538, %v634
    %636 = vmatprep.mubr.bf16.mxu0 0
    %637 = vmatmul.mubr.bf16.gmra.mrb[0].mxu0 %v578
    %v638 = vpop.f32.mrb[0].mxu0
    %v639 = vadd.f32 %v543, %v638
    %v640 = vpop.f32.mrb[0].mxu0
    %v641 = vadd.f32 %v543, %v640
    %v642 = vpop.f32.mrb[0].mxu0
    %v643 = vadd.f32 %v548, %v642
    %v644 = vpop.f32.mrb[0].mxu0
    %v645 = vadd.f32 %v548, %v644
    %646 = vmatprep.mubr.bf16.mxu0 0
    %647 = vmatmul.mubr.bf16.gmra.mrb[0].mxu0 %v579
    %v648 = vpop.f32.mrb[0].mxu0
    %v649 = vadd.f32 %v553, %v648
    %v650 = vpop.f32.mrb[0].mxu0
    %v651 = vadd.f32 %v553, %v650
    %v652 = vpop.f32.mrb[0].mxu0
    %v653 = vadd.f32 %v558, %v652
    %v654 = vpop.f32.mrb[0].mxu0
    %v655 = vadd.f32 %v558, %v654
    %656 = vdwg.mxu0
    %v657 = vmax.f32 %v619, 0.0
    %v658 = vmax.f32 %v621, 0.0
    %v659 = vmax.f32 %v623, 0.0
    %v660 = vmax.f32 %v625, 0.0
    %v661 = vmax.f32 %v629, 0.0
    %v662 = vmax.f32 %v631, 0.0
    %v663 = vmax.f32 %v633, 0.0
    %v664 = vmax.f32 %v635, 0.0
    %v665 = vmax.f32 %v639, 0.0
    %v666 = vmax.f32 %v641, 0.0
    %v667 = vmax.f32 %v643, 0.0
    %v668 = vmax.f32 %v645, 0.0
    %v669 = vmax.f32 %v649, 0.0
    %v670 = vmax.f32 %v651, 0.0
    %v671 = vmax.f32 %v653, 0.0
    %v672 = vmax.f32 %v655, 0.0
    %v673 = vld [vmem:[%s5] sm:$0xf]
    %v674 = vld [vmem:[%s5 + $0x4] sm:$0xf]
    %v675 = vld [vmem:[%s5 + $0x8] sm:$0xf]
    %v676 = vld [vmem:[%s5 + $0xc] sm:$0xf]
    %v677 = vpack.c.bf16 %v659, %v657
    %v678 = vpack.c.bf16 %v660, %v658
    %v679 = vpack.c.bf16 %v663, %v661
    %v680 = vpack.c.bf16 %v664, %v662
    %v681 = vpack.c.bf16 %v667, %v665
    %v682 = vpack.c.bf16 %v668, %v666
    %v683 = vpack.c.bf16 %v671, %v669
    %v684 = vpack.c.bf16 %v672, %v670
    %v685 = vld [vmem:[%s6] sm:$0xff]
    %v686 = vld [vmem:[%s6 + $0x8] sm:$0xff]
    %v687 = vld [vmem:[%s6 + $0x10] sm:$0xff]
    %v688 = vld [vmem:[%s6 + $0x18] sm:$0xff]
    %690 = vset.pattern.permute.xlu0 0
    %691 = vperm.xlu0 %690, %v685
    %v692 = vpop.permute.xlu0 %691
    %695 = vset.pattern.permute.xlu0 0
    %696 = vperm.xlu0 %695, %v686
    %v697 = vpop.permute.xlu0 %696
    %700 = vset.pattern.permute.xlu0 0
    %701 = vperm.xlu0 %700, %v687
    %v702 = vpop.permute.xlu0 %701
    %705 = vset.pattern.permute.xlu0 0
    %706 = vperm.xlu0 %705, %v688
    %v707 = vpop.permute.xlu0 %706
    %v713 = vunpack.c.l.b16 %v673
    %v714 = vunpack.c.l.b16 %v674
    %v715 = vunpack.c.l.b16 %v675
    %v716 = vunpack.c.l.b16 %v676
    %v717 = vpack.c.b16 %v714, %v713
    %v718 = vpack.c.b16 %v716, %v715
    %vm719 = vcmask 523264
    %v721 = vsel %vm719, %v717, 0
    %v724 = vsel %vm719, %v718, 0
    %726 = vmatprep.subr.bf16.mxu0 %v678
    %727 = vmatpush1.bf16.msra.mxu0 %v677
    %728 = vmatprep.subr.bf16.mxu0 %v680
    %729 = vmatpush1.bf16.msra.mxu0 %v679
    %730 = vmatprep.subr.bf16.mxu0 %v682
    %731 = vmatpush1.bf16.msra.mxu0 %v681
    %732 = vmatprep.subr.bf16.mxu0 %v684
    %733 = vmatpush1.bf16.msra.mxu0 %v683
    %734 = vmatprep.subr.bf16.mxu0 0
    %735 = vmatpush1.bf16.msra.mxu0 0
    %736 = vmatprep.subr.bf16.mxu0 0
    %737 = vmatpush1.bf16.msra.mxu0 0
    %738 = vmatprep.subr.bf16.mxu0 0
    %739 = vmatpush1.bf16.msra.mxu0 0
    %740 = vmatprep.subr.bf16.mxu0 0
    %741 = vmatpush1.bf16.msra.mxu0 0
    %742 = vmatprep.subr.bf16.mxu0 0
    %743 = vmatpush1.bf16.msra.mxu0 0
    %744 = vmatprep.subr.bf16.mxu0 0
    %745 = vmatpush1.bf16.msra.mxu0 0
    %746 = vmatprep.subr.bf16.mxu0 0
    %747 = vmatpush1.bf16.msra.mxu0 0
    %748 = vmatprep.subr.bf16.mxu0 0
    %749 = vmatpush1.bf16.msra.mxu0 0
    %750 = vmatprep.subr.bf16.mxu0 0
    %751 = vmatpush1.bf16.msra.mxu0 0
    %752 = vmatprep.subr.bf16.mxu0 0
    %753 = vmatpush1.bf16.msra.mxu0 0
    %754 = vmatprep.subr.bf16.mxu0 0
    %755 = vmatpush1.bf16.msra.mxu0 0
    %756 = vmatprep.subr.bf16.mxu0 0
    %757 = vmatpush1.bf16.msra.mxu0 0
    %758 = vmatprep.mubr.bf16.mxu0 0
    %759 = vmatmul.mubr.bf16.gmra.mrb[0].mxu0 %v721
    %v760 = vpop.f32.mrb[0].mxu0
    %v761 = vadd.f32 %v692, %v760
    %v762 = vpop.f32.mrb[0].mxu0
    %v763 = vadd.f32 %v692, %v762
    %v764 = vpop.f32.mrb[0].mxu0
    %v765 = vadd.f32 %v697, %v764
    %v766 = vpop.f32.mrb[0].mxu0
    %v767 = vadd.f32 %v697, %v766
    %768 = vmatprep.mubr.bf16.mxu0 0
    %769 = vmatmul.mubr.bf16.gmra.mrb[0].mxu0 %v724
    %v770 = vpop.f32.mrb[0].mxu0
    %v771 = vadd.f32 %v702, %v770
    %v772 = vpop.f32.mrb[0].mxu0
    %v773 = vadd.f32 %v702, %v772
    %v774 = vpop.f32.mrb[0].mxu0
    %v775 = vadd.f32 %v707, %v774
    %v776 = vpop.f32.mrb[0].mxu0
    %v777 = vadd.f32 %v707, %v776
    %778 = vdwg.mxu0
    %v779 = vmax.f32 %v761, 0.0
    %v780 = vmax.f32 %v763, 0.0
    %v781 = vmax.f32 %v765, 0.0
    %v782 = vmax.f32 %v767, 0.0
    %v783 = vmax.f32 %v771, 0.0
    %v784 = vmax.f32 %v773, 0.0
    %v785 = vmax.f32 %v775, 0.0
    %v786 = vmax.f32 %v777, 0.0
    %v787 = vld [vmem:[%s7] sm:$0x1]
    %v788 = vpack.c.bf16 %v781, %v779
    %v789 = vpack.c.bf16 %v782, %v780
    %v790 = vpack.c.bf16 %v785, %v783
    %v791 = vpack.c.bf16 %v786, %v784
    %v792 = vld [vmem:[%s8] sm:$0x3]
    %794 = vset.pattern.permute.xlu0 0
    %795 = vperm.xlu0 %794, %v792
    %v796 = vpop.permute.xlu0 %795
    %vm798 = vcmask 261120
    %v800 = vsel %vm798, %v787, 0
    %802 = vmatprep.subr.bf16.mxu0 %v789
    %803 = vmatpush1.bf16.msra.mxu0 %v788
    %804 = vmatprep.subr.bf16.mxu0 %v791
    %805 = vmatpush1.bf16.msra.mxu0 %v790
    %806 = vmatprep.subr.bf16.mxu0 0
    %807 = vmatpush1.bf16.msra.mxu0 0
    %808 = vmatprep.subr.bf16.mxu0 0
    %809 = vmatpush1.bf16.msra.mxu0 0
    %810 = vmatprep.subr.bf16.mxu0 0
    %811 = vmatpush1.bf16.msra.mxu0 0
    %812 = vmatprep.subr.bf16.mxu0 0
    %813 = vmatpush1.bf16.msra.mxu0 0
    %814 = vmatprep.subr.bf16.mxu0 0
    %815 = vmatpush1.bf16.msra.mxu0 0
    %816 = vmatprep.subr.bf16.mxu0 0
    %817 = vmatpush1.bf16.msra.mxu0 0
    %818 = vmatprep.subr.bf16.mxu0 0
    %819 = vmatpush1.bf16.msra.mxu0 0
    %820 = vmatprep.subr.bf16.mxu0 0
    %821 = vmatpush1.bf16.msra.mxu0 0
    %822 = vmatprep.subr.bf16.mxu0 0
    %823 = vmatpush1.bf16.msra.mxu0 0
    %824 = vmatprep.subr.bf16.mxu0 0
    %825 = vmatpush1.bf16.msra.mxu0 0
    %826 = vmatprep.subr.bf16.mxu0 0
    %827 = vmatpush1.bf16.msra.mxu0 0
    %828 = vmatprep.subr.bf16.mxu0 0
    %829 = vmatpush1.bf16.msra.mxu0 0
    %830 = vmatprep.subr.bf16.mxu0 0
    %831 = vmatpush1.bf16.msra.mxu0 0
    %832 = vmatprep.subr.bf16.mxu0 0
    %833 = vmatpush1.bf16.msra.mxu0 0
    %834 = vmatprep.mubr.bf16.mxu0 0
    %835 = vmatmul.mubr.bf16.gmra.mrb[0].mxu0 %v800
    %v836 = vpop.f32.mrb[0].mxu0
    %v837 = vadd.f32 %v796, %v836
    %v838 = vpop.f32.mrb[0].mxu0
    %v839 = vadd.f32 %v796, %v838
    %v840 = vpop.f32.mrb[0].mxu0
    %v841 = vpop.f32.mrb[0].mxu0
    %842 = vdwg.mxu0
    %v845 = vcombine.low %v837, %v839
    %v847 = vunpack.c.l.s4 1983009808
    %v848 = vunpack.c.0.s8 %v847
    %v849 = vlaneseq
    %v850 = vshrl.u32 %v849, 7
    %v851 = vsub.s32 %v848, %v850
    %v852 = vrot.slane %v845, %v851
    %854 = vst [vmem:[#allocation2] sm:$0xf] %v852
    // Predicated region
    $region38: #{tpu_custom_call.1} parent=1 // pred_check
      _
    $region39: #{tpu_custom_call.1} parent=1 // pred_check_branch
      %856 = sbr.rel (0) target = $region41
    $region40: #{tpu_custom_call.1} parent=1 // pred_region
      %s858 = ssub.s32 64, 32
      %859 = vsyncadd [#allocation3], %s858
      %s861 = sshll.u32 [#allocation2], 4
      %s862 = int_to_ptr.vmem [resolvable:$true] %s861
      %864 = dma.vmem_to_hbm [thread:$0]  %s862, 32, %s9, [#allocation3]
    $region41: #{tpu_custom_call.1} parent=1 // pred_fallthru
      _
    // Predicated region
    $region42: #{tpu_custom_call.1} parent=1 // pred_check
      _
    $region43: #{tpu_custom_call.1} parent=1 // pred_check_branch
      %866 = sbr.rel (0) target = $region45
    $region44: #{tpu_custom_call.1} parent=1 // pred_region
      %867 = dma.done [#allocation3], 64
    $region45: #{tpu_custom_call.1} parent=1 // pred_fallthru
      _
    %868 = vsyncpa [#allocation3], 1

</llo_original>
